<compile_context>
chip_gen: v7x
topology: tpu7x:2x2x1
jax: 0.10.0
libtpu: 0.0.40
codegen_flags: <defaults>
</compile_context>

<pallas_src>
import numpy as np
import jax
import jax.numpy as jnp
from jax import lax
from jax.experimental import pallas as pl
from jax.experimental.pallas import tpu as pltpu


# ----------------------------------------------------------------------------
# Glue: sparsemax (sort-based), done in plain JAX on the (tiny) parameters.
# ----------------------------------------------------------------------------
def sparsemax(z, axis=-1):
    assert axis == -1
    z = jnp.asarray(z, jnp.float32)
    n = z.shape[-1]
    z_sorted = -jnp.sort(-z, axis=-1)                      # descending
    k = jnp.arange(1, n + 1, dtype=z.dtype)
    z_cumsum = jnp.cumsum(z_sorted, axis=-1)
    support = (1.0 + k * z_sorted) > z_cumsum
    k_sup = jnp.sum(support.astype(z.dtype), axis=-1, keepdims=True)
    idx = (k_sup - 1.0).astype(jnp.int32)
    tau = (jnp.take_along_axis(z_cumsum, idx, axis=-1) - 1.0) / k_sup
    return jnp.maximum(z - tau, 0.0)


# ----------------------------------------------------------------------------
# Pallas kernel: batched backward DP, single invocation, static unrolled loop.
# ----------------------------------------------------------------------------
def pfa_kernel(ohrep_ref,     # (Lmax, B_pad, S*S) f32: onehot(x_bt) repeated S times
               lengths_ref,   # (B_pad, 1) int32
               et_ref,        # (S*S, S) f32: ET[x*S+j, q] = E_sm[q,x]*T_sm[q,x,j]
               alphaexp_ref,  # (S, 1) f32: exp(sparsemax(alpha))
               omega_ref,     # (1, S) f32: sparsemax(omega)
               aux_ref):      # (B_pad, 1) f32 out: per-sequence inner value
    Lmax = ohrep_ref.shape[0]
    B_pad = ohrep_ref.shape[1]
    S = omega_ref.shape[1]

    et = et_ref[...]                                       # hoist constant loads
    lengths = lengths_ref[...]                             # (B_pad, 1) int32

    # Probability-domain chart, boundary condition chart[:, K] = sparsemax(omega).
    chart0 = jnp.broadcast_to(omega_ref[...], (B_pad, S))
    scale0 = jnp.zeros((B_pad, 1), jnp.float32)            # running log-scale

    def step(i, carry):
        chart, logscale = carry
        t = Lmax - 1 - i                                   # process t = Lmax-1 .. 0
        ohr = ohrep_ref[t]                                 # (B_pad, S*S)
        m = ohr * jnp.tile(chart, (1, S))                  # m[b, x*S+j] = oh[b,x]*chart[b,j]
        new_chart = jnp.dot(m, et,
                            preferred_element_type=jnp.float32)   # (B_pad, S), MXU
        # Renormalize (prevents underflow; exact up to fp rounding).
        mx = jnp.max(new_chart, axis=-1, keepdims=True)
        mx_safe = jnp.where(mx > 0.0, mx, 1.0)             # all-zero row stays zero
        new_chart = new_chart / mx_safe
        new_logscale = logscale + jnp.log(mx_safe)
        # Rows with t >= length keep the omega boundary value.
        active = t < lengths                               # (B_pad, 1) bool
        chart = jnp.where(active, new_chart, chart)
        logscale = jnp.where(active, new_logscale, logscale)
        return chart, logscale

    chart, logscale = lax.fori_loop(0, Lmax, step, (chart0, scale0), unroll=True)

    # inner_b = logsumexp_q(alpha_sm[q] + log chart_b[q])
    #         = logscale_b + log( sum_q exp(alpha_sm[q]) * chart_b[q] )
    s = jnp.dot(chart, alphaexp_ref[...],
                preferred_element_type=jnp.float32)        # (B_pad, 1)
    aux_ref[...] = logscale + jnp.log(s)


def pfa_forward(xs, alpha, omega, E, T, padding=0):
    """Eval-mode PFA forward. xs: (B, L) int32. Returns (prob[(1,)], aux[(B,)])."""
    S = alpha.shape[1]
    B, L = xs.shape
    B_pad = ((B + 7) // 8) * 8                             # pad batch to f32 sublanes

    # --- parameter preprocessing (glue, tiny) ---
    alpha_sm = sparsemax(alpha)                            # (1, S)
    omega_sm = sparsemax(omega)                            # (1, S)
    E_sm = sparsemax(E)                                    # (S, S)    [q, x]
    T_sm = sparsemax(T)                                    # (S, S, S) [q, x, j]
    ET = E_sm[:, :, None] * T_sm                           # (q, x, j)
    ET_flat = jnp.transpose(ET, (1, 2, 0)).reshape(S * S, S)   # [(x, j), q]
    alpha_exp = jnp.exp(alpha_sm).reshape(S, 1)            # (S, 1)

    # --- token preprocessing: xs[mask].split(valid) -> compact tokens per row ---
    mask = xs != padding
    lengths = mask.sum(axis=1).astype(jnp.int32)
    order = jnp.argsort(jnp.logical_not(mask), axis=1, stable=True)
    tokens = jnp.take_along_axis(xs, order, axis=1).astype(jnp.int32)

    oh = jax.nn.one_hot(tokens, S, dtype=jnp.float32)      # (B, L, S)
    oh_rep = jnp.repeat(oh, S, axis=-1)                    # (B, L, S*S): [..., x*S+j]=oh[...,x]
    oh_rep = jnp.transpose(oh_rep, (1, 0, 2))              # (L, B, S*S)
    oh_rep = jnp.pad(oh_rep, ((0, 0), (0, B_pad - B), (0, 0)))
    lengths_col = jnp.pad(lengths.reshape(B, 1), ((0, B_pad - B), (0, 0)))

    grid_spec = pltpu.PrefetchScalarGridSpec(
        num_scalar_prefetch=0,
        grid=(1,),
        in_specs=[
            pl.BlockSpec((L, B_pad, S * S), lambda i: (0, 0, 0)),   # oh_rep
            pl.BlockSpec((B_pad, 1), lambda i: (0, 0)),             # lengths
            pl.BlockSpec((S * S, S), lambda i: (0, 0)),             # ET_flat
            pl.BlockSpec((S, 1), lambda i: (0, 0)),                 # exp(alpha_sm)
            pl.BlockSpec((1, S), lambda i: (0, 0)),                 # omega_sm
        ],
        out_specs=pl.BlockSpec((B_pad, 1), lambda i: (0, 0)),
    )

    aux_pad = pl.pallas_call(
        pfa_kernel,
        out_shape=jax.ShapeDtypeStruct((B_pad, 1), jnp.float32),
        grid_spec=grid_spec,
        compiler_params=pltpu.CompilerParams(dimension_semantics=("arbitrary",)),
    )(oh_rep, lengths_col, ET_flat, alpha_exp, omega_sm)

    aux = aux_pad[:B, 0]
    prob = jnp.sum(jnp.log(aux)).reshape(1)                # exact torch semantics
    return prob, aux


# ----------------------------------------------------------------------------
# Pure-JAX/numpy reference (mirrors torch eval branch exactly).
# ----------------------------------------------------------------------------
def _np_logsumexp(a, axis=-1):
    m = np.max(a, axis=axis, keepdims=True)
    m_safe = np.where(m > -np.inf, m, 0.0)
    return np.log(np.sum(np.exp(a - m_safe), axis=axis)) + np.squeeze(m_safe, axis=axis)


def reference_forward(xs_np, alpha, omega, E, T, padding=0):
    S = alpha.shape[1]
    with np.errstate(divide="ignore", invalid="ignore"):
        alpha_sm = np.asarray(sparsemax(alpha))
        log_omega = np.log(np.asarray(sparsemax(omega)))
        logE = np.log(np.asarray(sparsemax(E)))
        logT = np.log(np.asarray(sparsemax(T)))
        prob = 0.0
        aux = []
        for row in xs_np:
            seq = [int(v) for v in row if int(v) != padding]
            K = len(seq)
            chart = np.zeros((S, K + 1), dtype=np.float64)
            chart[:, K] = log_omega[0, :]
            for t in reversed(range(K)):
                x = seq[t]
                scores = logT[:, x, :] + chart[:, t + 1][None, :]
                chart[:, t] = logE[:, x] + _np_logsumexp(scores, axis=-1)
            inner = _np_logsumexp(alpha_sm[0, :] + chart[:, 0], axis=-1)
            aux.append(inner)
            prob = prob + np.log(inner)
    return np.float32(prob), np.array(aux, dtype=np.float32)


# ----------------------------------------------------------------------------
def xavier_uniform(key, shape):
    receptive = int(np.prod(shape[2:])) if len(shape) > 2 else 1
    fan_in = shape[1] * receptive
    fan_out = shape[0] * receptive
    bound = float(np.sqrt(6.0 / (fan_in + fan_out)))
    return jax.random.uniform(key, shape, jnp.float32, -bound, bound)


if __name__ == "__main__":
    S = 8           # vocab_size == num_states (required for torch broadcasting to work)
    B, L = 2, 8

    key = jax.random.PRNGKey(0)
    k_a, k_o, k_e, k_t, k_x = jax.random.split(key, 5)

    # torch init: all params here are >=2-D -> xavier_uniform_
    alpha = xavier_uniform(k_a, (1, S))
    omega = xavier_uniform(k_o, (1, S))
    E = xavier_uniform(k_e, (S, S))
    T = xavier_uniform(k_t, (S, S, S))

    # symbols in [1, S); 0 is padding
    xs = jax.random.randint(k_x, (B, L), 1, S).astype(jnp.int32)
    xs = xs.at[0, 6:].set(0)   # seq 0 has length 6
    xs = xs.at[1, 4:].set(0)   # seq 1 has length 4

    prob, aux = pfa_forward(xs, alpha, omega, E, T, padding=0)
    prob = jax.block_until_ready(prob)
    aux = jax.block_until_ready(aux)

    ref_prob, ref_aux = reference_forward(np.asarray(xs), alpha, omega, E, T, padding=0)

    assert np.allclose(np.asarray(aux), ref_aux, atol=1e-4, rtol=1e-4), (aux, ref_aux)
    assert np.allclose(np.asarray(prob)[0], ref_prob, atol=1e-4, rtol=1e-4,
                       equal_nan=True), (prob, ref_prob)

    print("KERNEL_OK")
</pallas_src>

<mosaic_0001>
module attributes {stable_mosaic.version = 11 : i64} {
  func.func @pfa_kernel(%arg0: i32, %arg1: memref<8x8x64xf32, #tpu.memory_space<vmem>>, %arg2: memref<8x1xi32, #tpu.memory_space<vmem>>, %arg3: memref<64x8xf32, #tpu.memory_space<vmem>>, %arg4: memref<8x1xf32, #tpu.memory_space<vmem>>, %arg5: memref<1x8xf32, #tpu.memory_space<vmem>>, %arg6: memref<8x1xf32, #tpu.memory_space<vmem>>) attributes {dimension_semantics = [#tpu.dimension_semantics<arbitrary>], iteration_bounds = array<i64: 1>, scalar_prefetch = 0 : i64, scratch_operands = 0 : i64, tpu.core_type = #tpu.core_type<tc>, window_params = [{pipeline_mode = #tpu.pipeline_mode<synchronous>, transform_indices = @transform_0, window_bounds = array<i64: 8, 8, 64>}, {pipeline_mode = #tpu.pipeline_mode<synchronous>, transform_indices = @transform_1, window_bounds = array<i64: 8, 1>}, {pipeline_mode = #tpu.pipeline_mode<synchronous>, transform_indices = @transform_2, window_bounds = array<i64: 64, 8>}, {pipeline_mode = #tpu.pipeline_mode<synchronous>, transform_indices = @transform_3, window_bounds = array<i64: 8, 1>}, {pipeline_mode = #tpu.pipeline_mode<synchronous>, transform_indices = @transform_4, window_bounds = array<i64: 1, 8>}, {pipeline_mode = #tpu.pipeline_mode<synchronous>, transform_indices = @transform_5, window_bounds = array<i64: 8, 1>}]} {
    %c0 = arith.constant 0 : index
    %c0_0 = arith.constant 0 : index
    %0 = vector.load %arg3[%c0, %c0_0] : memref<64x8xf32, #tpu.memory_space<vmem>>, vector<64x8xf32>
    %c0_1 = arith.constant 0 : index
    %c0_2 = arith.constant 0 : index
    %1 = vector.load %arg2[%c0_1, %c0_2] : memref<8x1xi32, #tpu.memory_space<vmem>>, vector<8x1xi32>
    %c0_3 = arith.constant 0 : index
    %c0_4 = arith.constant 0 : index
    %2 = vector.load %arg5[%c0_3, %c0_4] : memref<1x8xf32, #tpu.memory_space<vmem>>, vector<1x8xf32>
    %3 = vector.shape_cast %2 : vector<1x8xf32> to vector<1x8xf32>
    %4 = vector.broadcast %3 : vector<1x8xf32> to vector<8x8xf32>
    %cst = arith.constant 0.000000e+00 : f32
    %5 = vector.broadcast %cst : f32 to vector<8x1xf32>
    %c0_i32 = arith.constant 0 : i32
    %c7_i32 = arith.constant 7 : i32
    %6 = arith.subi %c7_i32, %c0_i32 : i32
    %7 = arith.index_cast %6 : i32 to index
    %c0_5 = arith.constant 0 : index
    %c0_6 = arith.constant 0 : index
    %8 = vector.load %arg1[%7, %c0_5, %c0_6] : memref<8x8x64xf32, #tpu.memory_space<vmem>>, vector<1x8x64xf32>
    %9 = vector.shape_cast %8 : vector<1x8x64xf32> to vector<8x64xf32>
    %10 = tpu.concatenate %4, %4, %4, %4, %4, %4, %4, %4 in 1 : vector<8x8xf32>, vector<8x8xf32>, vector<8x8xf32>, vector<8x8xf32>, vector<8x8xf32>, vector<8x8xf32>, vector<8x8xf32>, vector<8x8xf32> -> vector<8x64xf32>
    %11 = arith.mulf %9, %10 : vector<8x64xf32>
    %cst_7 = arith.constant dense<0.000000e+00> : vector<8x8xf32>
    %12 = tpu.matmul %11, %0, %cst_7 {dimension_numbers = #tpu.dot_dimension_numbers<[1], [0], [0], [1], [0, 0, 1, 1], [], []>} : vector<8x64xf32>, vector<64x8xf32>, vector<8x8xf32> -> vector<8x8xf32>
    %cst_8 = arith.constant dense<0xFF800000> : vector<8xf32>
    %13 = vector.multi_reduction <maximumf>, %12, %cst_8 [1] : vector<8x8xf32> to vector<8xf32>
    %14 = vector.shape_cast %13 : vector<8xf32> to vector<8x1xf32>
    %cst_9 = arith.constant 0.000000e+00 : f32
    %15 = vector.broadcast %cst_9 : f32 to vector<8x1xf32>
    %16 = arith.cmpf ogt, %14, %15 : vector<8x1xf32>
    %cst_10 = arith.constant 1.000000e+00 : f32
    %17 = vector.broadcast %cst_10 : f32 to vector<8x1xf32>
    %18 = arith.select %16, %14, %17 : vector<8x1xi1>, vector<8x1xf32>
    %19 = vector.broadcast %18 : vector<8x1xf32> to vector<8x8xf32>
    %20 = arith.divf %12, %19 : vector<8x8xf32>
    %21 = math.log %18 : vector<8x1xf32>
    %22 = arith.addf %5, %21 : vector<8x1xf32>
    %23 = vector.broadcast %6 : i32 to vector<8x1xi32>
    %24 = arith.cmpi slt, %23, %1 : vector<8x1xi32>
    %25 = vector.shape_cast %24 : vector<8x1xi1> to vector<8x1xi1>
    %26 = vector.broadcast %25 : vector<8x1xi1> to vector<8x8xi1>
    %27 = arith.select %26, %20, %4 : vector<8x8xi1>, vector<8x8xf32>
    %28 = arith.select %24, %22, %5 : vector<8x1xi1>, vector<8x1xf32>
    %c1_i32 = arith.constant 1 : i32
    %c7_i32_11 = arith.constant 7 : i32
    %29 = arith.subi %c7_i32_11, %c1_i32 : i32
    %30 = arith.index_cast %29 : i32 to index
    %c0_12 = arith.constant 0 : index
    %c0_13 = arith.constant 0 : index
    %31 = vector.load %arg1[%30, %c0_12, %c0_13] : memref<8x8x64xf32, #tpu.memory_space<vmem>>, vector<1x8x64xf32>
    %32 = vector.shape_cast %31 : vector<1x8x64xf32> to vector<8x64xf32>
    %33 = tpu.concatenate %27, %27, %27, %27, %27, %27, %27, %27 in 1 : vector<8x8xf32>, vector<8x8xf32>, vector<8x8xf32>, vector<8x8xf32>, vector<8x8xf32>, vector<8x8xf32>, vector<8x8xf32>, vector<8x8xf32> -> vector<8x64xf32>
    %34 = arith.mulf %32, %33 : vector<8x64xf32>
    %cst_14 = arith.constant dense<0.000000e+00> : vector<8x8xf32>
    %35 = tpu.matmul %34, %0, %cst_14 {dimension_numbers = #tpu.dot_dimension_numbers<[1], [0], [0], [1], [0, 0, 1, 1], [], []>} : vector<8x64xf32>, vector<64x8xf32>, vector<8x8xf32> -> vector<8x8xf32>
    %cst_15 = arith.constant dense<0xFF800000> : vector<8xf32>
    %36 = vector.multi_reduction <maximumf>, %35, %cst_15 [1] : vector<8x8xf32> to vector<8xf32>
    %37 = vector.shape_cast %36 : vector<8xf32> to vector<8x1xf32>
    %cst_16 = arith.constant 0.000000e+00 : f32
    %38 = vector.broadcast %cst_16 : f32 to vector<8x1xf32>
    %39 = arith.cmpf ogt, %37, %38 : vector<8x1xf32>
    %cst_17 = arith.constant 1.000000e+00 : f32
    %40 = vector.broadcast %cst_17 : f32 to vector<8x1xf32>
    %41 = arith.select %39, %37, %40 : vector<8x1xi1>, vector<8x1xf32>
    %42 = vector.broadcast %41 : vector<8x1xf32> to vector<8x8xf32>
    %43 = arith.divf %35, %42 : vector<8x8xf32>
    %44 = math.log %41 : vector<8x1xf32>
    %45 = arith.addf %28, %44 : vector<8x1xf32>
    %46 = vector.broadcast %29 : i32 to vector<8x1xi32>
    %47 = arith.cmpi slt, %46, %1 : vector<8x1xi32>
    %48 = vector.shape_cast %47 : vector<8x1xi1> to vector<8x1xi1>
    %49 = vector.broadcast %48 : vector<8x1xi1> to vector<8x8xi1>
    %50 = arith.select %49, %43, %27 : vector<8x8xi1>, vector<8x8xf32>
    %51 = arith.select %47, %45, %28 : vector<8x1xi1>, vector<8x1xf32>
    %c2_i32 = arith.constant 2 : i32
    %c7_i32_18 = arith.constant 7 : i32
    %52 = arith.subi %c7_i32_18, %c2_i32 : i32
    %53 = arith.index_cast %52 : i32 to index
    %c0_19 = arith.constant 0 : index
    %c0_20 = arith.constant 0 : index
    %54 = vector.load %arg1[%53, %c0_19, %c0_20] : memref<8x8x64xf32, #tpu.memory_space<vmem>>, vector<1x8x64xf32>
    %55 = vector.shape_cast %54 : vector<1x8x64xf32> to vector<8x64xf32>
    %56 = tpu.concatenate %50, %50, %50, %50, %50, %50, %50, %50 in 1 : vector<8x8xf32>, vector<8x8xf32>, vector<8x8xf32>, vector<8x8xf32>, vector<8x8xf32>, vector<8x8xf32>, vector<8x8xf32>, vector<8x8xf32> -> vector<8x64xf32>
    %57 = arith.mulf %55, %56 : vector<8x64xf32>
    %cst_21 = arith.constant dense<0.000000e+00> : vector<8x8xf32>
    %58 = tpu.matmul %57, %0, %cst_21 {dimension_numbers = #tpu.dot_dimension_numbers<[1], [0], [0], [1], [0, 0, 1, 1], [], []>} : vector<8x64xf32>, vector<64x8xf32>, vector<8x8xf32> -> vector<8x8xf32>
    %cst_22 = arith.constant dense<0xFF800000> : vector<8xf32>
    %59 = vector.multi_reduction <maximumf>, %58, %cst_22 [1] : vector<8x8xf32> to vector<8xf32>
    %60 = vector.shape_cast %59 : vector<8xf32> to vector<8x1xf32>
    %cst_23 = arith.constant 0.000000e+00 : f32
    %61 = vector.broadcast %cst_23 : f32 to vector<8x1xf32>
    %62 = arith.cmpf ogt, %60, %61 : vector<8x1xf32>
    %cst_24 = arith.constant 1.000000e+00 : f32
    %63 = vector.broadcast %cst_24 : f32 to vector<8x1xf32>
    %64 = arith.select %62, %60, %63 : vector<8x1xi1>, vector<8x1xf32>
    %65 = vector.broadcast %64 : vector<8x1xf32> to vector<8x8xf32>
    %66 = arith.divf %58, %65 : vector<8x8xf32>
    %67 = math.log %64 : vector<8x1xf32>
    %68 = arith.addf %51, %67 : vector<8x1xf32>
    %69 = vector.broadcast %52 : i32 to vector<8x1xi32>
    %70 = arith.cmpi slt, %69, %1 : vector<8x1xi32>
    %71 = vector.shape_cast %70 : vector<8x1xi1> to vector<8x1xi1>
    %72 = vector.broadcast %71 : vector<8x1xi1> to vector<8x8xi1>
    %73 = arith.select %72, %66, %50 : vector<8x8xi1>, vector<8x8xf32>
    %74 = arith.select %70, %68, %51 : vector<8x1xi1>, vector<8x1xf32>
    %c3_i32 = arith.constant 3 : i32
    %c7_i32_25 = arith.constant 7 : i32
    %75 = arith.subi %c7_i32_25, %c3_i32 : i32
    %76 = arith.index_cast %75 : i32 to index
    %c0_26 = arith.constant 0 : index
    %c0_27 = arith.constant 0 : index
    %77 = vector.load %arg1[%76, %c0_26, %c0_27] : memref<8x8x64xf32, #tpu.memory_space<vmem>>, vector<1x8x64xf32>
    %78 = vector.shape_cast %77 : vector<1x8x64xf32> to vector<8x64xf32>
    %79 = tpu.concatenate %73, %73, %73, %73, %73, %73, %73, %73 in 1 : vector<8x8xf32>, vector<8x8xf32>, vector<8x8xf32>, vector<8x8xf32>, vector<8x8xf32>, vector<8x8xf32>, vector<8x8xf32>, vector<8x8xf32> -> vector<8x64xf32>
    %80 = arith.mulf %78, %79 : vector<8x64xf32>
    %cst_28 = arith.constant dense<0.000000e+00> : vector<8x8xf32>
    %81 = tpu.matmul %80, %0, %cst_28 {dimension_numbers = #tpu.dot_dimension_numbers<[1], [0], [0], [1], [0, 0, 1, 1], [], []>} : vector<8x64xf32>, vector<64x8xf32>, vector<8x8xf32> -> vector<8x8xf32>
    %cst_29 = arith.constant dense<0xFF800000> : vector<8xf32>
    %82 = vector.multi_reduction <maximumf>, %81, %cst_29 [1] : vector<8x8xf32> to vector<8xf32>
    %83 = vector.shape_cast %82 : vector<8xf32> to vector<8x1xf32>
    %cst_30 = arith.constant 0.000000e+00 : f32
    %84 = vector.broadcast %cst_30 : f32 to vector<8x1xf32>
    %85 = arith.cmpf ogt, %83, %84 : vector<8x1xf32>
    %cst_31 = arith.constant 1.000000e+00 : f32
    %86 = vector.broadcast %cst_31 : f32 to vector<8x1xf32>
    %87 = arith.select %85, %83, %86 : vector<8x1xi1>, vector<8x1xf32>
    %88 = vector.broadcast %87 : vector<8x1xf32> to vector<8x8xf32>
    %89 = arith.divf %81, %88 : vector<8x8xf32>
    %90 = math.log %87 : vector<8x1xf32>
    %91 = arith.addf %74, %90 : vector<8x1xf32>
    %92 = vector.broadcast %75 : i32 to vector<8x1xi32>
    %93 = arith.cmpi slt, %92, %1 : vector<8x1xi32>
    %94 = vector.shape_cast %93 : vector<8x1xi1> to vector<8x1xi1>
    %95 = vector.broadcast %94 : vector<8x1xi1> to vector<8x8xi1>
    %96 = arith.select %95, %89, %73 : vector<8x8xi1>, vector<8x8xf32>
    %97 = arith.select %93, %91, %74 : vector<8x1xi1>, vector<8x1xf32>
    %c4_i32 = arith.constant 4 : i32
    %c7_i32_32 = arith.constant 7 : i32
    %98 = arith.subi %c7_i32_32, %c4_i32 : i32
    %99 = arith.index_cast %98 : i32 to index
    %c0_33 = arith.constant 0 : index
    %c0_34 = arith.constant 0 : index
    %100 = vector.load %arg1[%99, %c0_33, %c0_34] : memref<8x8x64xf32, #tpu.memory_space<vmem>>, vector<1x8x64xf32>
    %101 = vector.shape_cast %100 : vector<1x8x64xf32> to vector<8x64xf32>
    %102 = tpu.concatenate %96, %96, %96, %96, %96, %96, %96, %96 in 1 : vector<8x8xf32>, vector<8x8xf32>, vector<8x8xf32>, vector<8x8xf32>, vector<8x8xf32>, vector<8x8xf32>, vector<8x8xf32>, vector<8x8xf32> -> vector<8x64xf32>
    %103 = arith.mulf %101, %102 : vector<8x64xf32>
    %cst_35 = arith.constant dense<0.000000e+00> : vector<8x8xf32>
    %104 = tpu.matmul %103, %0, %cst_35 {dimension_numbers = #tpu.dot_dimension_numbers<[1], [0], [0], [1], [0, 0, 1, 1], [], []>} : vector<8x64xf32>, vector<64x8xf32>, vector<8x8xf32> -> vector<8x8xf32>
    %cst_36 = arith.constant dense<0xFF800000> : vector<8xf32>
    %105 = vector.multi_reduction <maximumf>, %104, %cst_36 [1] : vector<8x8xf32> to vector<8xf32>
    %106 = vector.shape_cast %105 : vector<8xf32> to vector<8x1xf32>
    %cst_37 = arith.constant 0.000000e+00 : f32
    %107 = vector.broadcast %cst_37 : f32 to vector<8x1xf32>
    %108 = arith.cmpf ogt, %106, %107 : vector<8x1xf32>
    %cst_38 = arith.constant 1.000000e+00 : f32
    %109 = vector.broadcast %cst_38 : f32 to vector<8x1xf32>
    %110 = arith.select %108, %106, %109 : vector<8x1xi1>, vector<8x1xf32>
    %111 = vector.broadcast %110 : vector<8x1xf32> to vector<8x8xf32>
    %112 = arith.divf %104, %111 : vector<8x8xf32>
    %113 = math.log %110 : vector<8x1xf32>
    %114 = arith.addf %97, %113 : vector<8x1xf32>
    %115 = vector.broadcast %98 : i32 to vector<8x1xi32>
    %116 = arith.cmpi slt, %115, %1 : vector<8x1xi32>
    %117 = vector.shape_cast %116 : vector<8x1xi1> to vector<8x1xi1>
    %118 = vector.broadcast %117 : vector<8x1xi1> to vector<8x8xi1>
    %119 = arith.select %118, %112, %96 : vector<8x8xi1>, vector<8x8xf32>
    %120 = arith.select %116, %114, %97 : vector<8x1xi1>, vector<8x1xf32>
    %c5_i32 = arith.constant 5 : i32
    %c7_i32_39 = arith.constant 7 : i32
    %121 = arith.subi %c7_i32_39, %c5_i32 : i32
    %122 = arith.index_cast %121 : i32 to index
    %c0_40 = arith.constant 0 : index
    %c0_41 = arith.constant 0 : index
    %123 = vector.load %arg1[%122, %c0_40, %c0_41] : memref<8x8x64xf32, #tpu.memory_space<vmem>>, vector<1x8x64xf32>
    %124 = vector.shape_cast %123 : vector<1x8x64xf32> to vector<8x64xf32>
    %125 = tpu.concatenate %119, %119, %119, %119, %119, %119, %119, %119 in 1 : vector<8x8xf32>, vector<8x8xf32>, vector<8x8xf32>, vector<8x8xf32>, vector<8x8xf32>, vector<8x8xf32>, vector<8x8xf32>, vector<8x8xf32> -> vector<8x64xf32>
    %126 = arith.mulf %124, %125 : vector<8x64xf32>
    %cst_42 = arith.constant dense<0.000000e+00> : vector<8x8xf32>
    %127 = tpu.matmul %126, %0, %cst_42 {dimension_numbers = #tpu.dot_dimension_numbers<[1], [0], [0], [1], [0, 0, 1, 1], [], []>} : vector<8x64xf32>, vector<64x8xf32>, vector<8x8xf32> -> vector<8x8xf32>
    %cst_43 = arith.constant dense<0xFF800000> : vector<8xf32>
    %128 = vector.multi_reduction <maximumf>, %127, %cst_43 [1] : vector<8x8xf32> to vector<8xf32>
    %129 = vector.shape_cast %128 : vector<8xf32> to vector<8x1xf32>
    %cst_44 = arith.constant 0.000000e+00 : f32
    %130 = vector.broadcast %cst_44 : f32 to vector<8x1xf32>
    %131 = arith.cmpf ogt, %129, %130 : vector<8x1xf32>
    %cst_45 = arith.constant 1.000000e+00 : f32
    %132 = vector.broadcast %cst_45 : f32 to vector<8x1xf32>
    %133 = arith.select %131, %129, %132 : vector<8x1xi1>, vector<8x1xf32>
    %134 = vector.broadcast %133 : vector<8x1xf32> to vector<8x8xf32>
    %135 = arith.divf %127, %134 : vector<8x8xf32>
    %136 = math.log %133 : vector<8x1xf32>
    %137 = arith.addf %120, %136 : vector<8x1xf32>
    %138 = vector.broadcast %121 : i32 to vector<8x1xi32>
    %139 = arith.cmpi slt, %138, %1 : vector<8x1xi32>
    %140 = vector.shape_cast %139 : vector<8x1xi1> to vector<8x1xi1>
    %141 = vector.broadcast %140 : vector<8x1xi1> to vector<8x8xi1>
    %142 = arith.select %141, %135, %119 : vector<8x8xi1>, vector<8x8xf32>
    %143 = arith.select %139, %137, %120 : vector<8x1xi1>, vector<8x1xf32>
    %c6_i32 = arith.constant 6 : i32
    %c7_i32_46 = arith.constant 7 : i32
    %144 = arith.subi %c7_i32_46, %c6_i32 : i32
    %145 = arith.index_cast %144 : i32 to index
    %c0_47 = arith.constant 0 : index
    %c0_48 = arith.constant 0 : index
    %146 = vector.load %arg1[%145, %c0_47, %c0_48] : memref<8x8x64xf32, #tpu.memory_space<vmem>>, vector<1x8x64xf32>
    %147 = vector.shape_cast %146 : vector<1x8x64xf32> to vector<8x64xf32>
    %148 = tpu.concatenate %142, %142, %142, %142, %142, %142, %142, %142 in 1 : vector<8x8xf32>, vector<8x8xf32>, vector<8x8xf32>, vector<8x8xf32>, vector<8x8xf32>, vector<8x8xf32>, vector<8x8xf32>, vector<8x8xf32> -> vector<8x64xf32>
    %149 = arith.mulf %147, %148 : vector<8x64xf32>
    %cst_49 = arith.constant dense<0.000000e+00> : vector<8x8xf32>
    %150 = tpu.matmul %149, %0, %cst_49 {dimension_numbers = #tpu.dot_dimension_numbers<[1], [0], [0], [1], [0, 0, 1, 1], [], []>} : vector<8x64xf32>, vector<64x8xf32>, vector<8x8xf32> -> vector<8x8xf32>
    %cst_50 = arith.constant dense<0xFF800000> : vector<8xf32>
    %151 = vector.multi_reduction <maximumf>, %150, %cst_50 [1] : vector<8x8xf32> to vector<8xf32>
    %152 = vector.shape_cast %151 : vector<8xf32> to vector<8x1xf32>
    %cst_51 = arith.constant 0.000000e+00 : f32
    %153 = vector.broadcast %cst_51 : f32 to vector<8x1xf32>
    %154 = arith.cmpf ogt, %152, %153 : vector<8x1xf32>
    %cst_52 = arith.constant 1.000000e+00 : f32
    %155 = vector.broadcast %cst_52 : f32 to vector<8x1xf32>
    %156 = arith.select %154, %152, %155 : vector<8x1xi1>, vector<8x1xf32>
    %157 = vector.broadcast %156 : vector<8x1xf32> to vector<8x8xf32>
    %158 = arith.divf %150, %157 : vector<8x8xf32>
    %159 = math.log %156 : vector<8x1xf32>
    %160 = arith.addf %143, %159 : vector<8x1xf32>
    %161 = vector.broadcast %144 : i32 to vector<8x1xi32>
    %162 = arith.cmpi slt, %161, %1 : vector<8x1xi32>
    %163 = vector.shape_cast %162 : vector<8x1xi1> to vector<8x1xi1>
    %164 = vector.broadcast %163 : vector<8x1xi1> to vector<8x8xi1>
    %165 = arith.select %164, %158, %142 : vector<8x8xi1>, vector<8x8xf32>
    %166 = arith.select %162, %160, %143 : vector<8x1xi1>, vector<8x1xf32>
    %c7_i32_53 = arith.constant 7 : i32
    %c7_i32_54 = arith.constant 7 : i32
    %167 = arith.subi %c7_i32_54, %c7_i32_53 : i32
    %168 = arith.index_cast %167 : i32 to index
    %c0_55 = arith.constant 0 : index
    %c0_56 = arith.constant 0 : index
    %169 = vector.load %arg1[%168, %c0_55, %c0_56] : memref<8x8x64xf32, #tpu.memory_space<vmem>>, vector<1x8x64xf32>
    %170 = vector.shape_cast %169 : vector<1x8x64xf32> to vector<8x64xf32>
    %171 = tpu.concatenate %165, %165, %165, %165, %165, %165, %165, %165 in 1 : vector<8x8xf32>, vector<8x8xf32>, vector<8x8xf32>, vector<8x8xf32>, vector<8x8xf32>, vector<8x8xf32>, vector<8x8xf32>, vector<8x8xf32> -> vector<8x64xf32>
    %172 = arith.mulf %170, %171 : vector<8x64xf32>
    %cst_57 = arith.constant dense<0.000000e+00> : vector<8x8xf32>
    %173 = tpu.matmul %172, %0, %cst_57 {dimension_numbers = #tpu.dot_dimension_numbers<[1], [0], [0], [1], [0, 0, 1, 1], [], []>} : vector<8x64xf32>, vector<64x8xf32>, vector<8x8xf32> -> vector<8x8xf32>
    %cst_58 = arith.constant dense<0xFF800000> : vector<8xf32>
    %174 = vector.multi_reduction <maximumf>, %173, %cst_58 [1] : vector<8x8xf32> to vector<8xf32>
    %175 = vector.shape_cast %174 : vector<8xf32> to vector<8x1xf32>
    %cst_59 = arith.constant 0.000000e+00 : f32
    %176 = vector.broadcast %cst_59 : f32 to vector<8x1xf32>
    %177 = arith.cmpf ogt, %175, %176 : vector<8x1xf32>
    %cst_60 = arith.constant 1.000000e+00 : f32
    %178 = vector.broadcast %cst_60 : f32 to vector<8x1xf32>
    %179 = arith.select %177, %175, %178 : vector<8x1xi1>, vector<8x1xf32>
    %180 = vector.broadcast %179 : vector<8x1xf32> to vector<8x8xf32>
    %181 = arith.divf %173, %180 : vector<8x8xf32>
    %182 = math.log %179 : vector<8x1xf32>
    %183 = arith.addf %166, %182 : vector<8x1xf32>
    %184 = vector.broadcast %167 : i32 to vector<8x1xi32>
    %185 = arith.cmpi slt, %184, %1 : vector<8x1xi32>
    %186 = vector.shape_cast %185 : vector<8x1xi1> to vector<8x1xi1>
    %187 = vector.broadcast %186 : vector<8x1xi1> to vector<8x8xi1>
    %188 = arith.select %187, %181, %165 : vector<8x8xi1>, vector<8x8xf32>
    %189 = arith.select %185, %183, %166 : vector<8x1xi1>, vector<8x1xf32>
    %c8_i32 = arith.constant 8 : i32
    %c0_61 = arith.constant 0 : index
    %c0_62 = arith.constant 0 : index
    %190 = vector.load %arg4[%c0_61, %c0_62] : memref<8x1xf32, #tpu.memory_space<vmem>>, vector<8x1xf32>
    %cst_63 = arith.constant dense<0.000000e+00> : vector<8x1xf32>
    %191 = tpu.matmul %188, %190, %cst_63 {dimension_numbers = #tpu.dot_dimension_numbers<[1], [0], [0], [1], [0, 0, 1, 1], [], []>} : vector<8x8xf32>, vector<8x1xf32>, vector<8x1xf32> -> vector<8x1xf32>
    %192 = math.log %191 : vector<8x1xf32>
    %193 = arith.addf %189, %192 : vector<8x1xf32>
    %c0_64 = arith.constant 0 : index
    %c0_65 = arith.constant 0 : index
    %194 = vector.load %arg6[%c0_64, %c0_65] : memref<8x1xf32, #tpu.memory_space<vmem>>, vector<8x1xf32>
    tpu.vector_store %arg6[%c0_64, %c0_65], %193 {strides = array<i32>} : memref<8x1xf32, #tpu.memory_space<vmem>>, vector<8x1xf32>,
    return
  }
  func.func @transform_0(%arg0: i32) -> (i32, i32, i32) {
    %c0_i32 = arith.constant 0 : i32
    %c0_i32_0 = arith.constant 0 : i32
    %c0_i32_1 = arith.constant 0 : i32
    %c0_i32_2 = arith.constant 0 : i32
    return %c0_i32, %c0_i32_0, %c0_i32_1 : i32, i32, i32
  }
  func.func @transform_1(%arg0: i32) -> (i32, i32) {
    %c0_i32 = arith.constant 0 : i32
    %c0_i32_0 = arith.constant 0 : i32
    %c0_i32_1 = arith.constant 0 : i32
    return %c0_i32, %c0_i32_0 : i32, i32
  }
  func.func @transform_2(%arg0: i32) -> (i32, i32) {
    %c0_i32 = arith.constant 0 : i32
    %c0_i32_0 = arith.constant 0 : i32
    %c0_i32_1 = arith.constant 0 : i32
    return %c0_i32, %c0_i32_0 : i32, i32
  }
  func.func @transform_3(%arg0: i32) -> (i32, i32) {
    %c0_i32 = arith.constant 0 : i32
    %c0_i32_0 = arith.constant 0 : i32
    %c0_i32_1 = arith.constant 0 : i32
    return %c0_i32, %c0_i32_0 : i32, i32
  }
  func.func @transform_4(%arg0: i32) -> (i32, i32) {
    %c0_i32 = arith.constant 0 : i32
    %c0_i32_0 = arith.constant 0 : i32
    %c0_i32_1 = arith.constant 0 : i32
    return %c0_i32, %c0_i32_0 : i32, i32
  }
  func.func @transform_5(%arg0: i32) -> (i32, i32) {
    %c0_i32 = arith.constant 0 : i32
    %c0_i32_0 = arith.constant 0 : i32
    %c0_i32_1 = arith.constant 0 : i32
    return %c0_i32, %c0_i32_0 : i32, i32
  }
}

</mosaic_0001>

<llo_original>
// kernel: tpu_custom_call.1
$region0: #{tpu_custom_call.1}
  #allocation0 [shape = 'u32[]', space=smem, size = 0x4, offset = 0x4, fixed_abs, tag = 'smem constant byte address 0x4 - core index']
  #allocation1 [shape = 'u32[144,128]{1,0:T(1,128)}', space=vmem, size = 0x12000, scoped, tag = 'internal scratch']
  %s0 = inlined_call_operand.vmem [shape: f32[8,8,64], index: 0, kind: input, shape index: {}]
  %s1 = inlined_call_operand.vmem [shape: s32[8,1], index: 1, kind: input, shape index: {}]
  %s2 = inlined_call_operand.vmem [shape: f32[64,8], index: 2, kind: input, shape index: {}]
  %s3 = inlined_call_operand.vmem [shape: f32[8,1], index: 3, kind: input, shape index: {}]
  %s4 = inlined_call_operand.vmem [shape: f32[1,8], index: 4, kind: input, shape index: {}]
  %s5 = inlined_call_operand.vmem [shape: f32[8,1], index: 5, kind: output, shape index: {}]
  %s6 = sld [smem:[#allocation0]]
  $region30: #{tpu_custom_call.1} parent=0
    _
  %s8 = ssub.s32 1, %s6
  %s9 = scalar_select 0, %s8, %s6
  // Predicated region
  $region2: #{tpu_custom_call.1} parent=0 // pred_check
    _
  $region3: #{tpu_custom_call.1} parent=0 // pred_check_branch
    %11 = sbr.rel (0) target = $region5
  $region4: #{tpu_custom_call.1} parent=0 // pred_region
    _
  $region5: #{tpu_custom_call.1} parent=0 // pred_fallthru
    _
  // Predicated region
  $region6: #{tpu_custom_call.1} parent=0 // pred_check
    _
  $region7: #{tpu_custom_call.1} parent=0 // pred_check_branch
    %13 = sbr.rel (0) target = $region9
  $region8: #{tpu_custom_call.1} parent=0 // pred_region
    _
  $region9: #{tpu_custom_call.1} parent=0 // pred_fallthru
    _
  // Predicated region
  $region10: #{tpu_custom_call.1} parent=0 // pred_check
    _
  $region11: #{tpu_custom_call.1} parent=0 // pred_check_branch
    %15 = sbr.rel (0) target = $region13
  $region12: #{tpu_custom_call.1} parent=0 // pred_region
    _
  $region13: #{tpu_custom_call.1} parent=0 // pred_fallthru
    _
  // Predicated region
  $region14: #{tpu_custom_call.1} parent=0 // pred_check
    _
  $region15: #{tpu_custom_call.1} parent=0 // pred_check_branch
    %17 = sbr.rel (0) target = $region17
  $region16: #{tpu_custom_call.1} parent=0 // pred_region
    _
  $region17: #{tpu_custom_call.1} parent=0 // pred_fallthru
    _
  // Predicated region
  $region18: #{tpu_custom_call.1} parent=0 // pred_check
    _
  $region19: #{tpu_custom_call.1} parent=0 // pred_check_branch
    %19 = sbr.rel (0) target = $region21
  $region20: #{tpu_custom_call.1} parent=0 // pred_region
    _
  $region21: #{tpu_custom_call.1} parent=0 // pred_fallthru
    _
  %v20 = vld [vmem:[%s2] sm:$0xff]
  %v21 = vld [vmem:[%s2 + $0x8] sm:$0xff]
  %v22 = vld [vmem:[%s2 + $0x10] sm:$0xff]
  %v23 = vld [vmem:[%s2 + $0x18] sm:$0xff]
  %v24 = vld [vmem:[%s2 + $0x20] sm:$0xff]
  %v25 = vld [vmem:[%s2 + $0x28] sm:$0xff]
  %v26 = vld [vmem:[%s2 + $0x30] sm:$0xff]
  %v27 = vld [vmem:[%s2 + $0x38] sm:$0xff]
  %v28 = vld [vmem:[%s1] sm:$0xff]
  %v29 = vld [vmem:[%s4] sm:$0x1]
  %v31 = vlaneseq
  %v32 = vshrl.u32 %v31, 7
  %v33 = vsub.s32 0, %v32
  %v34 = vrot.slane %v29, %v33
  %s36 = scalar_lea.vmem %s0, 56
  %v37 = vld [vmem:[%s36] sm:$0xff]
  %38 = vrot.lane.b32.xlu0 %v34, 8
  %v39 = vpop.permute.xlu0 %38
  %41 = vrot.lane.b32.xlu0 %v34, 16
  %v42 = vpop.permute.xlu0 %41
  %44 = vrot.lane.b32.xlu0 %v34, 24
  %v45 = vpop.permute.xlu0 %44
  %47 = vrot.lane.b32.xlu0 %v34, 32
  %v48 = vpop.permute.xlu0 %47
  %50 = vrot.lane.b32.xlu0 %v34, 40
  %v51 = vpop.permute.xlu0 %50
  %53 = vrot.lane.b32.xlu0 %v34, 48
  %v54 = vpop.permute.xlu0 %53
  %56 = vrot.lane.b32.xlu0 %v34, 56
  %v57 = vpop.permute.xlu0 %56
  %vm59 = vcmask 64512
  %v60 = vsel %vm59, %v34, %v39
  %vm61 = vcmask 130048
  %v62 = vsel %vm61, %v60, %v42
  %vm63 = vcmask 195584
  %v64 = vsel %vm63, %v62, %v45
  %vm65 = vcmask 261120
  %v66 = vsel %vm65, %v64, %v48
  %vm67 = vcmask 326656
  %v68 = vsel %vm67, %v66, %v51
  %vm69 = vcmask 392192
  %v70 = vsel %vm69, %v68, %v54
  %vm71 = vcmask 457728
  %v72 = vsel %vm71, %v70, %v57
  %v73 = vmul.f32 %v37, %v72
  %vm74 = vcmask 523264
  %v76 = vsel %vm74, %v73, 0
  %78 = vmatprep.subr.mxu0 0.0
  %79 = vmatpush1.msra.mxu0 %v20
  %80 = vmatprep.subr.mxu0 0.0
  %81 = vmatpush1.msra.mxu0 %v21
  %82 = vmatprep.subr.mxu0 0.0
  %83 = vmatpush1.msra.mxu0 %v22
  %84 = vmatprep.subr.mxu0 0.0
  %85 = vmatpush1.msra.mxu0 %v23
  %86 = vmatprep.subr.mxu0 0.0
  %87 = vmatpush1.msra.mxu0 %v24
  %88 = vmatprep.subr.mxu0 0.0
  %89 = vmatpush1.msra.mxu0 %v25
  %90 = vmatprep.subr.mxu0 0.0
  %91 = vmatpush1.msra.mxu0 %v26
  %92 = vmatprep.subr.mxu0 0.0
  %93 = vmatpush1.msra.mxu0 %v27
  %94 = vmatprep.subr.mxu0 0.0
  %95 = vmatpush1.msra.mxu0 0.0
  %96 = vmatprep.subr.mxu0 0.0
  %97 = vmatpush1.msra.mxu0 0.0
  %98 = vmatprep.subr.mxu0 0.0
  %99 = vmatpush1.msra.mxu0 0.0
  %100 = vmatprep.subr.mxu0 0.0
  %101 = vmatpush1.msra.mxu0 0.0
  %102 = vmatprep.subr.mxu0 0.0
  %103 = vmatpush1.msra.mxu0 0.0
  %104 = vmatprep.subr.mxu0 0.0
  %105 = vmatpush1.msra.mxu0 0.0
  %106 = vmatprep.subr.mxu0 0.0
  %107 = vmatpush1.msra.mxu0 0.0
  %108 = vmatprep.subr.mxu0 0.0
  %109 = vmatpush1.msra.mxu0 0.0
  %110 = vmatprep.subr.mxu0 0.0
  %111 = vmatpush1.msra.mxu0 0.0
  %112 = vmatprep.subr.mxu0 0.0
  %113 = vmatpush1.msra.mxu0 0.0
  %114 = vmatprep.subr.mxu0 0.0
  %115 = vmatpush1.msra.mxu0 0.0
  %116 = vmatprep.subr.mxu0 0.0
  %117 = vmatpush1.msra.mxu0 0.0
  %118 = vmatprep.subr.mxu0 0.0
  %119 = vmatpush1.msra.mxu0 0.0
  %120 = vmatprep.subr.mxu0 0.0
  %121 = vmatpush1.msra.mxu0 0.0
  %122 = vmatprep.subr.mxu0 0.0
  %123 = vmatpush1.msra.mxu0 0.0
  %124 = vmatprep.subr.mxu0 0.0
  %125 = vmatpush1.msra.mxu0 0.0
  %126 = vmatprep.subr.mxu0 0.0
  %127 = vmatpush1.msra.mxu0 0.0
  %128 = vmatprep.subr.mxu0 0.0
  %129 = vmatpush1.msra.mxu0 0.0
  %130 = vmatprep.subr.mxu0 0.0
  %131 = vmatpush1.msra.mxu0 0.0
  %132 = vmatprep.subr.mxu0 0.0
  %133 = vmatpush1.msra.mxu0 0.0
  %134 = vmatprep.subr.mxu0 0.0
  %135 = vmatpush1.msra.mxu0 0.0
  %136 = vmatprep.subr.mxu0 0.0
  %137 = vmatpush1.msra.mxu0 0.0
  %138 = vmatprep.subr.mxu0 0.0
  %139 = vmatpush1.msra.mxu0 0.0
  %140 = vmatprep.subr.mxu0 0.0
  %141 = vmatpush1.msra.mxu0 0.0
  %142 = vmatprep.mubr.f32.mxu0 0.0
  %143 = vmatmul.mubr.f32.gmra.mrb[0].mxu0 %v76
  %v144 = vpop.f32.mrb[0].mxu0
  %v145 = vadd.f32 0.0, %v144
  %v146 = vpop.f32.mrb[0].mxu0
  %147 = vdwg.mxu0
  %v148 = vsel %vm59, %v145, -inf
  %149 = vmax.xlane.f32.xlu0 %v148
  %v150 = vpop.xlane.xlu0 %149
  %vm151 = vcmp.gt.f32.partialorder %v150, 0.0
  %v152 = vsel %vm151, %v150, 1.0
  %v153 = vrcp.pop %v152
  %v154 = vmul.f32 %v145, %v153
  %v155 = vlog2.pop %v152
  %v156 = vmul.f32 %v155, 0.6931472
  %v157 = vadd.f32 %v156, 0.0
  %vm158 = vcmp.gt.s32.totalorder %v28, 7
  %v159 = vsel %vm158, 1, 0
  %160 = vset.pattern.permute.xlu0 0
  %161 = vperm.xlu0 %160, %v159
  %v162 = vpop.permute.xlu0 %161
  %vm163 = vcmp.eq.s32.totalorder %v162, 1
  %v164 = vsel %vm163, %v154, %v34
  %v165 = vsel %vm158, %v157, 0.0
  %s166 = scalar_lea.vmem %s0, 48
  %v167 = vld [vmem:[%s166] sm:$0xff]
  %169 = vrot.lane.b32.xlu0 %v164, 8
  %v170 = vpop.permute.xlu0 %169
  %172 = vrot.lane.b32.xlu0 %v164, 16
  %v173 = vpop.permute.xlu0 %172
  %175 = vrot.lane.b32.xlu0 %v164, 24
  %v176 = vpop.permute.xlu0 %175
  %178 = vrot.lane.b32.xlu0 %v164, 32
  %v179 = vpop.permute.xlu0 %178
  %181 = vrot.lane.b32.xlu0 %v164, 40
  %v182 = vpop.permute.xlu0 %181
  %184 = vrot.lane.b32.xlu0 %v164, 48
  %v185 = vpop.permute.xlu0 %184
  %187 = vrot.lane.b32.xlu0 %v164, 56
  %v188 = vpop.permute.xlu0 %187
  %v190 = vsel %vm59, %v164, %v170
  %v191 = vsel %vm61, %v190, %v173
  %v192 = vsel %vm63, %v191, %v176
  %v193 = vsel %vm65, %v192, %v179
  %v194 = vsel %vm67, %v193, %v182
  %v195 = vsel %vm69, %v194, %v185
  %v196 = vsel %vm71, %v195, %v188
  %v197 = vmul.f32 %v167, %v196
  %v199 = vsel %vm74, %v197, 0
  %201 = vmatprep.subr.mxu0 0.0
  %202 = vmatpush1.msra.mxu0 %v20
  %203 = vmatprep.subr.mxu0 0.0
  %204 = vmatpush1.msra.mxu0 %v21
  %205 = vmatprep.subr.mxu0 0.0
  %206 = vmatpush1.msra.mxu0 %v22
  %207 = vmatprep.subr.mxu0 0.0
  %208 = vmatpush1.msra.mxu0 %v23
  %209 = vmatprep.subr.mxu0 0.0
  %210 = vmatpush1.msra.mxu0 %v24
  %211 = vmatprep.subr.mxu0 0.0
  %212 = vmatpush1.msra.mxu0 %v25
  %213 = vmatprep.subr.mxu0 0.0
  %214 = vmatpush1.msra.mxu0 %v26
  %215 = vmatprep.subr.mxu0 0.0
  %216 = vmatpush1.msra.mxu0 %v27
  %217 = vmatprep.subr.mxu0 0.0
  %218 = vmatpush1.msra.mxu0 0.0
  %219 = vmatprep.subr.mxu0 0.0
  %220 = vmatpush1.msra.mxu0 0.0
  %221 = vmatprep.subr.mxu0 0.0
  %222 = vmatpush1.msra.mxu0 0.0
  %223 = vmatprep.subr.mxu0 0.0
  %224 = vmatpush1.msra.mxu0 0.0
  %225 = vmatprep.subr.mxu0 0.0
  %226 = vmatpush1.msra.mxu0 0.0
  %227 = vmatprep.subr.mxu0 0.0
  %228 = vmatpush1.msra.mxu0 0.0
  %229 = vmatprep.subr.mxu0 0.0
  %230 = vmatpush1.msra.mxu0 0.0
  %231 = vmatprep.subr.mxu0 0.0
  %232 = vmatpush1.msra.mxu0 0.0
  %233 = vmatprep.subr.mxu0 0.0
  %234 = vmatpush1.msra.mxu0 0.0
  %235 = vmatprep.subr.mxu0 0.0
  %236 = vmatpush1.msra.mxu0 0.0
  %237 = vmatprep.subr.mxu0 0.0
  %238 = vmatpush1.msra.mxu0 0.0
  %239 = vmatprep.subr.mxu0 0.0
  %240 = vmatpush1.msra.mxu0 0.0
  %241 = vmatprep.subr.mxu0 0.0
  %242 = vmatpush1.msra.mxu0 0.0
  %243 = vmatprep.subr.mxu0 0.0
  %244 = vmatpush1.msra.mxu0 0.0
  %245 = vmatprep.subr.mxu0 0.0
  %246 = vmatpush1.msra.mxu0 0.0
  %247 = vmatprep.subr.mxu0 0.0
  %248 = vmatpush1.msra.mxu0 0.0
  %249 = vmatprep.subr.mxu0 0.0
  %250 = vmatpush1.msra.mxu0 0.0
  %251 = vmatprep.subr.mxu0 0.0
  %252 = vmatpush1.msra.mxu0 0.0
  %253 = vmatprep.subr.mxu0 0.0
  %254 = vmatpush1.msra.mxu0 0.0
  %255 = vmatprep.subr.mxu0 0.0
  %256 = vmatpush1.msra.mxu0 0.0
  %257 = vmatprep.subr.mxu0 0.0
  %258 = vmatpush1.msra.mxu0 0.0
  %259 = vmatprep.subr.mxu0 0.0
  %260 = vmatpush1.msra.mxu0 0.0
  %261 = vmatprep.subr.mxu0 0.0
  %262 = vmatpush1.msra.mxu0 0.0
  %263 = vmatprep.subr.mxu0 0.0
  %264 = vmatpush1.msra.mxu0 0.0
  %265 = vmatprep.mubr.f32.mxu0 0.0
  %266 = vmatmul.mubr.f32.gmra.mrb[0].mxu0 %v199
  %v267 = vpop.f32.mrb[0].mxu0
  %v268 = vadd.f32 0.0, %v267
  %v269 = vpop.f32.mrb[0].mxu0
  %270 = vdwg.mxu0
  %v271 = vsel %vm59, %v268, -inf
  %272 = vmax.xlane.f32.xlu0 %v271
  %v273 = vpop.xlane.xlu0 %272
  %vm274 = vcmp.gt.f32.partialorder %v273, 0.0
  %v275 = vsel %vm274, %v273, 1.0
  %v276 = vrcp.pop %v275
  %v277 = vmul.f32 %v268, %v276
  %v278 = vlog2.pop %v275
  %v279 = vmul.f32 %v278, 0.6931472
  %v280 = vadd.f32 %v165, %v279
  %vm281 = vcmp.gt.s32.totalorder %v28, 6
  %v282 = vsel %vm281, 1, 0
  %283 = vset.pattern.permute.xlu0 0
  %284 = vperm.xlu0 %283, %v282
  %v285 = vpop.permute.xlu0 %284
  %vm286 = vcmp.eq.s32.totalorder %v285, 1
  %v287 = vsel %vm286, %v277, %v164
  %v288 = vsel %vm281, %v280, %v165
  %s289 = scalar_lea.vmem %s0, 40
  %v290 = vld [vmem:[%s289] sm:$0xff]
  %292 = vrot.lane.b32.xlu0 %v287, 8
  %v293 = vpop.permute.xlu0 %292
  %295 = vrot.lane.b32.xlu0 %v287, 16
  %v296 = vpop.permute.xlu0 %295
  %298 = vrot.lane.b32.xlu0 %v287, 24
  %v299 = vpop.permute.xlu0 %298
  %301 = vrot.lane.b32.xlu0 %v287, 32
  %v302 = vpop.permute.xlu0 %301
  %304 = vrot.lane.b32.xlu0 %v287, 40
  %v305 = vpop.permute.xlu0 %304
  %307 = vrot.lane.b32.xlu0 %v287, 48
  %v308 = vpop.permute.xlu0 %307
  %310 = vrot.lane.b32.xlu0 %v287, 56
  %v311 = vpop.permute.xlu0 %310
  %v313 = vsel %vm59, %v287, %v293
  %v314 = vsel %vm61, %v313, %v296
  %v315 = vsel %vm63, %v314, %v299
  %v316 = vsel %vm65, %v315, %v302
  %v317 = vsel %vm67, %v316, %v305
  %v318 = vsel %vm69, %v317, %v308
  %v319 = vsel %vm71, %v318, %v311
  %v320 = vmul.f32 %v290, %v319
  %v322 = vsel %vm74, %v320, 0
  %324 = vmatprep.subr.mxu0 0.0
  %325 = vmatpush1.msra.mxu0 %v20
  %326 = vmatprep.subr.mxu0 0.0
  %327 = vmatpush1.msra.mxu0 %v21
  %328 = vmatprep.subr.mxu0 0.0
  %329 = vmatpush1.msra.mxu0 %v22
  %330 = vmatprep.subr.mxu0 0.0
  %331 = vmatpush1.msra.mxu0 %v23
  %332 = vmatprep.subr.mxu0 0.0
  %333 = vmatpush1.msra.mxu0 %v24
  %334 = vmatprep.subr.mxu0 0.0
  %335 = vmatpush1.msra.mxu0 %v25
  %336 = vmatprep.subr.mxu0 0.0
  %337 = vmatpush1.msra.mxu0 %v26
  %338 = vmatprep.subr.mxu0 0.0
  %339 = vmatpush1.msra.mxu0 %v27
  %340 = vmatprep.subr.mxu0 0.0
  %341 = vmatpush1.msra.mxu0 0.0
  %342 = vmatprep.subr.mxu0 0.0
  %343 = vmatpush1.msra.mxu0 0.0
  %344 = vmatprep.subr.mxu0 0.0
  %345 = vmatpush1.msra.mxu0 0.0
  %346 = vmatprep.subr.mxu0 0.0
  %347 = vmatpush1.msra.mxu0 0.0
  %348 = vmatprep.subr.mxu0 0.0
  %349 = vmatpush1.msra.mxu0 0.0
  %350 = vmatprep.subr.mxu0 0.0
  %351 = vmatpush1.msra.mxu0 0.0
  %352 = vmatprep.subr.mxu0 0.0
  %353 = vmatpush1.msra.mxu0 0.0
  %354 = vmatprep.subr.mxu0 0.0
  %355 = vmatpush1.msra.mxu0 0.0
  %356 = vmatprep.subr.mxu0 0.0
  %357 = vmatpush1.msra.mxu0 0.0
  %358 = vmatprep.subr.mxu0 0.0
  %359 = vmatpush1.msra.mxu0 0.0
  %360 = vmatprep.subr.mxu0 0.0
  %361 = vmatpush1.msra.mxu0 0.0
  %362 = vmatprep.subr.mxu0 0.0
  %363 = vmatpush1.msra.mxu0 0.0
  %364 = vmatprep.subr.mxu0 0.0
  %365 = vmatpush1.msra.mxu0 0.0
  %366 = vmatprep.subr.mxu0 0.0
  %367 = vmatpush1.msra.mxu0 0.0
  %368 = vmatprep.subr.mxu0 0.0
  %369 = vmatpush1.msra.mxu0 0.0
  %370 = vmatprep.subr.mxu0 0.0
  %371 = vmatpush1.msra.mxu0 0.0
  %372 = vmatprep.subr.mxu0 0.0
  %373 = vmatpush1.msra.mxu0 0.0
  %374 = vmatprep.subr.mxu0 0.0
  %375 = vmatpush1.msra.mxu0 0.0
  %376 = vmatprep.subr.mxu0 0.0
  %377 = vmatpush1.msra.mxu0 0.0
  %378 = vmatprep.subr.mxu0 0.0
  %379 = vmatpush1.msra.mxu0 0.0
  %380 = vmatprep.subr.mxu0 0.0
  %381 = vmatpush1.msra.mxu0 0.0
  %382 = vmatprep.subr.mxu0 0.0
  %383 = vmatpush1.msra.mxu0 0.0
  %384 = vmatprep.subr.mxu0 0.0
  %385 = vmatpush1.msra.mxu0 0.0
  %386 = vmatprep.subr.mxu0 0.0
  %387 = vmatpush1.msra.mxu0 0.0
  %388 = vmatprep.mubr.f32.mxu0 0.0
  %389 = vmatmul.mubr.f32.gmra.mrb[0].mxu0 %v322
  %v390 = vpop.f32.mrb[0].mxu0
  %v391 = vadd.f32 0.0, %v390
  %v392 = vpop.f32.mrb[0].mxu0
  %393 = vdwg.mxu0
  %v394 = vsel %vm59, %v391, -inf
  %395 = vmax.xlane.f32.xlu0 %v394
  %v396 = vpop.xlane.xlu0 %395
  %vm397 = vcmp.gt.f32.partialorder %v396, 0.0
  %v398 = vsel %vm397, %v396, 1.0
  %v399 = vrcp.pop %v398
  %v400 = vmul.f32 %v391, %v399
  %v401 = vlog2.pop %v398
  %v402 = vmul.f32 %v401, 0.6931472
  %v403 = vadd.f32 %v288, %v402
  %vm404 = vcmp.gt.s32.totalorder %v28, 5
  %v405 = vsel %vm404, 1, 0
  %406 = vset.pattern.permute.xlu0 0
  %407 = vperm.xlu0 %406, %v405
  %v408 = vpop.permute.xlu0 %407
  %vm409 = vcmp.eq.s32.totalorder %v408, 1
  %v410 = vsel %vm409, %v400, %v287
  %v411 = vsel %vm404, %v403, %v288
  %s412 = scalar_lea.vmem %s0, 32
  %v413 = vld [vmem:[%s412] sm:$0xff]
  %415 = vrot.lane.b32.xlu0 %v410, 8
  %v416 = vpop.permute.xlu0 %415
  %418 = vrot.lane.b32.xlu0 %v410, 16
  %v419 = vpop.permute.xlu0 %418
  %421 = vrot.lane.b32.xlu0 %v410, 24
  %v422 = vpop.permute.xlu0 %421
  %424 = vrot.lane.b32.xlu0 %v410, 32
  %v425 = vpop.permute.xlu0 %424
  %427 = vrot.lane.b32.xlu0 %v410, 40
  %v428 = vpop.permute.xlu0 %427
  %430 = vrot.lane.b32.xlu0 %v410, 48
  %v431 = vpop.permute.xlu0 %430
  %433 = vrot.lane.b32.xlu0 %v410, 56
  %v434 = vpop.permute.xlu0 %433
  %v436 = vsel %vm59, %v410, %v416
  %v437 = vsel %vm61, %v436, %v419
  %v438 = vsel %vm63, %v437, %v422
  %v439 = vsel %vm65, %v438, %v425
  %v440 = vsel %vm67, %v439, %v428
  %v441 = vsel %vm69, %v440, %v431
  %v442 = vsel %vm71, %v441, %v434
  %v443 = vmul.f32 %v413, %v442
  %v445 = vsel %vm74, %v443, 0
  %447 = vmatprep.subr.mxu0 0.0
  %448 = vmatpush1.msra.mxu0 %v20
  %449 = vmatprep.subr.mxu0 0.0
  %450 = vmatpush1.msra.mxu0 %v21
  %451 = vmatprep.subr.mxu0 0.0
  %452 = vmatpush1.msra.mxu0 %v22
  %453 = vmatprep.subr.mxu0 0.0
  %454 = vmatpush1.msra.mxu0 %v23
  %455 = vmatprep.subr.mxu0 0.0
  %456 = vmatpush1.msra.mxu0 %v24
  %457 = vmatprep.subr.mxu0 0.0
  %458 = vmatpush1.msra.mxu0 %v25
  %459 = vmatprep.subr.mxu0 0.0
  %460 = vmatpush1.msra.mxu0 %v26
  %461 = vmatprep.subr.mxu0 0.0
  %462 = vmatpush1.msra.mxu0 %v27
  %463 = vmatprep.subr.mxu0 0.0
  %464 = vmatpush1.msra.mxu0 0.0
  %465 = vmatprep.subr.mxu0 0.0
  %466 = vmatpush1.msra.mxu0 0.0
  %467 = vmatprep.subr.mxu0 0.0
  %468 = vmatpush1.msra.mxu0 0.0
  %469 = vmatprep.subr.mxu0 0.0
  %470 = vmatpush1.msra.mxu0 0.0
  %471 = vmatprep.subr.mxu0 0.0
  %472 = vmatpush1.msra.mxu0 0.0
  %473 = vmatprep.subr.mxu0 0.0
  %474 = vmatpush1.msra.mxu0 0.0
  %475 = vmatprep.subr.mxu0 0.0
  %476 = vmatpush1.msra.mxu0 0.0
  %477 = vmatprep.subr.mxu0 0.0
  %478 = vmatpush1.msra.mxu0 0.0
  %479 = vmatprep.subr.mxu0 0.0
  %480 = vmatpush1.msra.mxu0 0.0
  %481 = vmatprep.subr.mxu0 0.0
  %482 = vmatpush1.msra.mxu0 0.0
  %483 = vmatprep.subr.mxu0 0.0
  %484 = vmatpush1.msra.mxu0 0.0
  %485 = vmatprep.subr.mxu0 0.0
  %486 = vmatpush1.msra.mxu0 0.0
  %487 = vmatprep.subr.mxu0 0.0
  %488 = vmatpush1.msra.mxu0 0.0
  %489 = vmatprep.subr.mxu0 0.0
  %490 = vmatpush1.msra.mxu0 0.0
  %491 = vmatprep.subr.mxu0 0.0
  %492 = vmatpush1.msra.mxu0 0.0
  %493 = vmatprep.subr.mxu0 0.0
  %494 = vmatpush1.msra.mxu0 0.0
  %495 = vmatprep.subr.mxu0 0.0
  %496 = vmatpush1.msra.mxu0 0.0
  %497 = vmatprep.subr.mxu0 0.0
  %498 = vmatpush1.msra.mxu0 0.0
  %499 = vmatprep.subr.mxu0 0.0
  %500 = vmatpush1.msra.mxu0 0.0
  %501 = vmatprep.subr.mxu0 0.0
  %502 = vmatpush1.msra.mxu0 0.0
  %503 = vmatprep.subr.mxu0 0.0
  %504 = vmatpush1.msra.mxu0 0.0
  %505 = vmatprep.subr.mxu0 0.0
  %506 = vmatpush1.msra.mxu0 0.0
  %507 = vmatprep.subr.mxu0 0.0
  %508 = vmatpush1.msra.mxu0 0.0
  %509 = vmatprep.subr.mxu0 0.0
  %510 = vmatpush1.msra.mxu0 0.0
  %511 = vmatprep.mubr.f32.mxu0 0.0
  %512 = vmatmul.mubr.f32.gmra.mrb[0].mxu0 %v445
  %v513 = vpop.f32.mrb[0].mxu0
  %v514 = vadd.f32 0.0, %v513
  %v515 = vpop.f32.mrb[0].mxu0
  %516 = vdwg.mxu0
  %v517 = vsel %vm59, %v514, -inf
  %518 = vmax.xlane.f32.xlu0 %v517
  %v519 = vpop.xlane.xlu0 %518
  %vm520 = vcmp.gt.f32.partialorder %v519, 0.0
  %v521 = vsel %vm520, %v519, 1.0
  %v522 = vrcp.pop %v521
  %v523 = vmul.f32 %v514, %v522
  %v524 = vlog2.pop %v521
  %v525 = vmul.f32 %v524, 0.6931472
  %v526 = vadd.f32 %v411, %v525
  %vm527 = vcmp.gt.s32.totalorder %v28, 4
  %v528 = vsel %vm527, 1, 0
  %529 = vset.pattern.permute.xlu0 0
  %530 = vperm.xlu0 %529, %v528
  %v531 = vpop.permute.xlu0 %530
  %vm532 = vcmp.eq.s32.totalorder %v531, 1
  %v533 = vsel %vm532, %v523, %v410
  %v534 = vsel %vm527, %v526, %v411
  %s535 = scalar_lea.vmem %s0, 24
  %v536 = vld [vmem:[%s535] sm:$0xff]
  %538 = vrot.lane.b32.xlu0 %v533, 8
  %v539 = vpop.permute.xlu0 %538
  %541 = vrot.lane.b32.xlu0 %v533, 16
  %v542 = vpop.permute.xlu0 %541
  %544 = vrot.lane.b32.xlu0 %v533, 24
  %v545 = vpop.permute.xlu0 %544
  %547 = vrot.lane.b32.xlu0 %v533, 32
  %v548 = vpop.permute.xlu0 %547
  %550 = vrot.lane.b32.xlu0 %v533, 40
  %v551 = vpop.permute.xlu0 %550
  %553 = vrot.lane.b32.xlu0 %v533, 48
  %v554 = vpop.permute.xlu0 %553
  %556 = vrot.lane.b32.xlu0 %v533, 56
  %v557 = vpop.permute.xlu0 %556
  %v559 = vsel %vm59, %v533, %v539
  %v560 = vsel %vm61, %v559, %v542
  %v561 = vsel %vm63, %v560, %v545
  %v562 = vsel %vm65, %v561, %v548
  %v563 = vsel %vm67, %v562, %v551
  %v564 = vsel %vm69, %v563, %v554
  %v565 = vsel %vm71, %v564, %v557
  %v566 = vmul.f32 %v536, %v565
  %v568 = vsel %vm74, %v566, 0
  %570 = vmatprep.subr.mxu0 0.0
  %571 = vmatpush1.msra.mxu0 %v20
  %572 = vmatprep.subr.mxu0 0.0
  %573 = vmatpush1.msra.mxu0 %v21
  %574 = vmatprep.subr.mxu0 0.0
  %575 = vmatpush1.msra.mxu0 %v22
  %576 = vmatprep.subr.mxu0 0.0
  %577 = vmatpush1.msra.mxu0 %v23
  %578 = vmatprep.subr.mxu0 0.0
  %579 = vmatpush1.msra.mxu0 %v24
  %580 = vmatprep.subr.mxu0 0.0
  %581 = vmatpush1.msra.mxu0 %v25
  %582 = vmatprep.subr.mxu0 0.0
  %583 = vmatpush1.msra.mxu0 %v26
  %584 = vmatprep.subr.mxu0 0.0
  %585 = vmatpush1.msra.mxu0 %v27
  %586 = vmatprep.subr.mxu0 0.0
  %587 = vmatpush1.msra.mxu0 0.0
  %588 = vmatprep.subr.mxu0 0.0
  %589 = vmatpush1.msra.mxu0 0.0
  %590 = vmatprep.subr.mxu0 0.0
  %591 = vmatpush1.msra.mxu0 0.0
  %592 = vmatprep.subr.mxu0 0.0
  %593 = vmatpush1.msra.mxu0 0.0
  %594 = vmatprep.subr.mxu0 0.0
  %595 = vmatpush1.msra.mxu0 0.0
  %596 = vmatprep.subr.mxu0 0.0
  %597 = vmatpush1.msra.mxu0 0.0
  %598 = vmatprep.subr.mxu0 0.0
  %599 = vmatpush1.msra.mxu0 0.0
  %600 = vmatprep.subr.mxu0 0.0
  %601 = vmatpush1.msra.mxu0 0.0
  %602 = vmatprep.subr.mxu0 0.0
  %603 = vmatpush1.msra.mxu0 0.0
  %604 = vmatprep.subr.mxu0 0.0
  %605 = vmatpush1.msra.mxu0 0.0
  %606 = vmatprep.subr.mxu0 0.0
  %607 = vmatpush1.msra.mxu0 0.0
  %608 = vmatprep.subr.mxu0 0.0
  %609 = vmatpush1.msra.mxu0 0.0
  %610 = vmatprep.subr.mxu0 0.0
  %611 = vmatpush1.msra.mxu0 0.0
  %612 = vmatprep.subr.mxu0 0.0
  %613 = vmatpush1.msra.mxu0 0.0
  %614 = vmatprep.subr.mxu0 0.0
  %615 = vmatpush1.msra.mxu0 0.0
  %616 = vmatprep.subr.mxu0 0.0
  %617 = vmatpush1.msra.mxu0 0.0
  %618 = vmatprep.subr.mxu0 0.0
  %619 = vmatpush1.msra.mxu0 0.0
  %620 = vmatprep.subr.mxu0 0.0
  %621 = vmatpush1.msra.mxu0 0.0
  %622 = vmatprep.subr.mxu0 0.0
  %623 = vmatpush1.msra.mxu0 0.0
  %624 = vmatprep.subr.mxu0 0.0
  %625 = vmatpush1.msra.mxu0 0.0
  %626 = vmatprep.subr.mxu0 0.0
  %627 = vmatpush1.msra.mxu0 0.0
  %628 = vmatprep.subr.mxu0 0.0
  %629 = vmatpush1.msra.mxu0 0.0
  %630 = vmatprep.subr.mxu0 0.0
  %631 = vmatpush1.msra.mxu0 0.0
  %632 = vmatprep.subr.mxu0 0.0
  %633 = vmatpush1.msra.mxu0 0.0
  %634 = vmatprep.mubr.f32.mxu0 0.0
  %635 = vmatmul.mubr.f32.gmra.mrb[0].mxu0 %v568
  %v636 = vpop.f32.mrb[0].mxu0
  %v637 = vadd.f32 0.0, %v636
  %v638 = vpop.f32.mrb[0].mxu0
  %639 = vdwg.mxu0
  %v640 = vsel %vm59, %v637, -inf
  %641 = vmax.xlane.f32.xlu0 %v640
  %v642 = vpop.xlane.xlu0 %641
  %vm643 = vcmp.gt.f32.partialorder %v642, 0.0
  %v644 = vsel %vm643, %v642, 1.0
  %v645 = vrcp.pop %v644
  %v646 = vmul.f32 %v637, %v645
  %v647 = vlog2.pop %v644
  %v648 = vmul.f32 %v647, 0.6931472
  %v649 = vadd.f32 %v534, %v648
  %vm650 = vcmp.gt.s32.totalorder %v28, 3
  %v651 = vsel %vm650, 1, 0
  %652 = vset.pattern.permute.xlu0 0
  %653 = vperm.xlu0 %652, %v651
  %v654 = vpop.permute.xlu0 %653
  %vm655 = vcmp.eq.s32.totalorder %v654, 1
  %v656 = vsel %vm655, %v646, %v533
  %v657 = vsel %vm650, %v649, %v534
  %s658 = scalar_lea.vmem %s0, 16
  %v659 = vld [vmem:[%s658] sm:$0xff]
  %661 = vrot.lane.b32.xlu0 %v656, 8
  %v662 = vpop.permute.xlu0 %661
  %664 = vrot.lane.b32.xlu0 %v656, 16
  %v665 = vpop.permute.xlu0 %664
  %667 = vrot.lane.b32.xlu0 %v656, 24
  %v668 = vpop.permute.xlu0 %667
  %670 = vrot.lane.b32.xlu0 %v656, 32
  %v671 = vpop.permute.xlu0 %670
  %673 = vrot.lane.b32.xlu0 %v656, 40
  %v674 = vpop.permute.xlu0 %673
  %676 = vrot.lane.b32.xlu0 %v656, 48
  %v677 = vpop.permute.xlu0 %676
  %679 = vrot.lane.b32.xlu0 %v656, 56
  %v680 = vpop.permute.xlu0 %679
  %v682 = vsel %vm59, %v656, %v662
  %v683 = vsel %vm61, %v682, %v665
  %v684 = vsel %vm63, %v683, %v668
  %v685 = vsel %vm65, %v684, %v671
  %v686 = vsel %vm67, %v685, %v674
  %v687 = vsel %vm69, %v686, %v677
  %v688 = vsel %vm71, %v687, %v680
  %v689 = vmul.f32 %v659, %v688
  %v691 = vsel %vm74, %v689, 0
  %693 = vmatprep.subr.mxu0 0.0
  %694 = vmatpush1.msra.mxu0 %v20
  %695 = vmatprep.subr.mxu0 0.0
  %696 = vmatpush1.msra.mxu0 %v21
  %697 = vmatprep.subr.mxu0 0.0
  %698 = vmatpush1.msra.mxu0 %v22
  %699 = vmatprep.subr.mxu0 0.0
  %700 = vmatpush1.msra.mxu0 %v23
  %701 = vmatprep.subr.mxu0 0.0
  %702 = vmatpush1.msra.mxu0 %v24
  %703 = vmatprep.subr.mxu0 0.0
  %704 = vmatpush1.msra.mxu0 %v25
  %705 = vmatprep.subr.mxu0 0.0
  %706 = vmatpush1.msra.mxu0 %v26
  %707 = vmatprep.subr.mxu0 0.0
  %708 = vmatpush1.msra.mxu0 %v27
  %709 = vmatprep.subr.mxu0 0.0
  %710 = vmatpush1.msra.mxu0 0.0
  %711 = vmatprep.subr.mxu0 0.0
  %712 = vmatpush1.msra.mxu0 0.0
  %713 = vmatprep.subr.mxu0 0.0
  %714 = vmatpush1.msra.mxu0 0.0
  %715 = vmatprep.subr.mxu0 0.0
  %716 = vmatpush1.msra.mxu0 0.0
  %717 = vmatprep.subr.mxu0 0.0
  %718 = vmatpush1.msra.mxu0 0.0
  %719 = vmatprep.subr.mxu0 0.0
  %720 = vmatpush1.msra.mxu0 0.0
  %721 = vmatprep.subr.mxu0 0.0
  %722 = vmatpush1.msra.mxu0 0.0
  %723 = vmatprep.subr.mxu0 0.0
  %724 = vmatpush1.msra.mxu0 0.0
  %725 = vmatprep.subr.mxu0 0.0
  %726 = vmatpush1.msra.mxu0 0.0
  %727 = vmatprep.subr.mxu0 0.0
  %728 = vmatpush1.msra.mxu0 0.0
  %729 = vmatprep.subr.mxu0 0.0
  %730 = vmatpush1.msra.mxu0 0.0
  %731 = vmatprep.subr.mxu0 0.0
  %732 = vmatpush1.msra.mxu0 0.0
  %733 = vmatprep.subr.mxu0 0.0
  %734 = vmatpush1.msra.mxu0 0.0
  %735 = vmatprep.subr.mxu0 0.0
  %736 = vmatpush1.msra.mxu0 0.0
  %737 = vmatprep.subr.mxu0 0.0
  %738 = vmatpush1.msra.mxu0 0.0
  %739 = vmatprep.subr.mxu0 0.0
  %740 = vmatpush1.msra.mxu0 0.0
  %741 = vmatprep.subr.mxu0 0.0
  %742 = vmatpush1.msra.mxu0 0.0
  %743 = vmatprep.subr.mxu0 0.0
  %744 = vmatpush1.msra.mxu0 0.0
  %745 = vmatprep.subr.mxu0 0.0
  %746 = vmatpush1.msra.mxu0 0.0
  %747 = vmatprep.subr.mxu0 0.0
  %748 = vmatpush1.msra.mxu0 0.0
  %749 = vmatprep.subr.mxu0 0.0
  %750 = vmatpush1.msra.mxu0 0.0
  %751 = vmatprep.subr.mxu0 0.0
  %752 = vmatpush1.msra.mxu0 0.0
  %753 = vmatprep.subr.mxu0 0.0
  %754 = vmatpush1.msra.mxu0 0.0
  %755 = vmatprep.subr.mxu0 0.0
  %756 = vmatpush1.msra.mxu0 0.0
  %757 = vmatprep.mubr.f32.mxu0 0.0
  %758 = vmatmul.mubr.f32.gmra.mrb[0].mxu0 %v691
  %v759 = vpop.f32.mrb[0].mxu0
  %v760 = vadd.f32 0.0, %v759
  %v761 = vpop.f32.mrb[0].mxu0
  %762 = vdwg.mxu0
  %v763 = vsel %vm59, %v760, -inf
  %764 = vmax.xlane.f32.xlu0 %v763
  %v765 = vpop.xlane.xlu0 %764
  %vm766 = vcmp.gt.f32.partialorder %v765, 0.0
  %v767 = vsel %vm766, %v765, 1.0
  %v768 = vrcp.pop %v767
  %v769 = vmul.f32 %v760, %v768
  %v770 = vlog2.pop %v767
  %v771 = vmul.f32 %v770, 0.6931472
  %v772 = vadd.f32 %v657, %v771
  %vm773 = vcmp.gt.s32.totalorder %v28, 2
  %v774 = vsel %vm773, 1, 0
  %775 = vset.pattern.permute.xlu0 0
  %776 = vperm.xlu0 %775, %v774
  %v777 = vpop.permute.xlu0 %776
  %vm778 = vcmp.eq.s32.totalorder %v777, 1
  %v779 = vsel %vm778, %v769, %v656
  %v780 = vsel %vm773, %v772, %v657
  %s781 = scalar_lea.vmem %s0, 8
  %v782 = vld [vmem:[%s781] sm:$0xff]
  %784 = vrot.lane.b32.xlu0 %v779, 8
  %v785 = vpop.permute.xlu0 %784
  %787 = vrot.lane.b32.xlu0 %v779, 16
  %v788 = vpop.permute.xlu0 %787
  %790 = vrot.lane.b32.xlu0 %v779, 24
  %v791 = vpop.permute.xlu0 %790
  %793 = vrot.lane.b32.xlu0 %v779, 32
  %v794 = vpop.permute.xlu0 %793
  %796 = vrot.lane.b32.xlu0 %v779, 40
  %v797 = vpop.permute.xlu0 %796
  %799 = vrot.lane.b32.xlu0 %v779, 48
  %v800 = vpop.permute.xlu0 %799
  %802 = vrot.lane.b32.xlu0 %v779, 56
  %v803 = vpop.permute.xlu0 %802
  %v805 = vsel %vm59, %v779, %v785
  %v806 = vsel %vm61, %v805, %v788
  %v807 = vsel %vm63, %v806, %v791
  %v808 = vsel %vm65, %v807, %v794
  %v809 = vsel %vm67, %v808, %v797
  %v810 = vsel %vm69, %v809, %v800
  %v811 = vsel %vm71, %v810, %v803
  %v812 = vmul.f32 %v782, %v811
  %v814 = vsel %vm74, %v812, 0
  %816 = vmatprep.subr.mxu0 0.0
  %817 = vmatpush1.msra.mxu0 %v20
  %818 = vmatprep.subr.mxu0 0.0
  %819 = vmatpush1.msra.mxu0 %v21
  %820 = vmatprep.subr.mxu0 0.0
  %821 = vmatpush1.msra.mxu0 %v22
  %822 = vmatprep.subr.mxu0 0.0
  %823 = vmatpush1.msra.mxu0 %v23
  %824 = vmatprep.subr.mxu0 0.0
  %825 = vmatpush1.msra.mxu0 %v24
  %826 = vmatprep.subr.mxu0 0.0
  %827 = vmatpush1.msra.mxu0 %v25
  %828 = vmatprep.subr.mxu0 0.0
  %829 = vmatpush1.msra.mxu0 %v26
  %830 = vmatprep.subr.mxu0 0.0
  %831 = vmatpush1.msra.mxu0 %v27
  %832 = vmatprep.subr.mxu0 0.0
  %833 = vmatpush1.msra.mxu0 0.0
  %834 = vmatprep.subr.mxu0 0.0
  %835 = vmatpush1.msra.mxu0 0.0
  %836 = vmatprep.subr.mxu0 0.0
  %837 = vmatpush1.msra.mxu0 0.0
  %838 = vmatprep.subr.mxu0 0.0
  %839 = vmatpush1.msra.mxu0 0.0
  %840 = vmatprep.subr.mxu0 0.0
  %841 = vmatpush1.msra.mxu0 0.0
  %842 = vmatprep.subr.mxu0 0.0
  %843 = vmatpush1.msra.mxu0 0.0
  %844 = vmatprep.subr.mxu0 0.0
  %845 = vmatpush1.msra.mxu0 0.0
  %846 = vmatprep.subr.mxu0 0.0
  %847 = vmatpush1.msra.mxu0 0.0
  %848 = vmatprep.subr.mxu0 0.0
  %849 = vmatpush1.msra.mxu0 0.0
  %850 = vmatprep.subr.mxu0 0.0
  %851 = vmatpush1.msra.mxu0 0.0
  %852 = vmatprep.subr.mxu0 0.0
  %853 = vmatpush1.msra.mxu0 0.0
  %854 = vmatprep.subr.mxu0 0.0
  %855 = vmatpush1.msra.mxu0 0.0
  %856 = vmatprep.subr.mxu0 0.0
  %857 = vmatpush1.msra.mxu0 0.0
  %858 = vmatprep.subr.mxu0 0.0
  %859 = vmatpush1.msra.mxu0 0.0
  %860 = vmatprep.subr.mxu0 0.0
  %861 = vmatpush1.msra.mxu0 0.0
  %862 = vmatprep.subr.mxu0 0.0
  %863 = vmatpush1.msra.mxu0 0.0
  %864 = vmatprep.subr.mxu0 0.0
  %865 = vmatpush1.msra.mxu0 0.0
  %866 = vmatprep.subr.mxu0 0.0
  %867 = vmatpush1.msra.mxu0 0.0
  %868 = vmatprep.subr.mxu0 0.0
  %869 = vmatpush1.msra.mxu0 0.0
  %870 = vmatprep.subr.mxu0 0.0
  %871 = vmatpush1.msra.mxu0 0.0
  %872 = vmatprep.subr.mxu0 0.0
  %873 = vmatpush1.msra.mxu0 0.0
  %874 = vmatprep.subr.mxu0 0.0
  %875 = vmatpush1.msra.mxu0 0.0
  %876 = vmatprep.subr.mxu0 0.0
  %877 = vmatpush1.msra.mxu0 0.0
  %878 = vmatprep.subr.mxu0 0.0
  %879 = vmatpush1.msra.mxu0 0.0
  %880 = vmatprep.mubr.f32.mxu0 0.0
  %881 = vmatmul.mubr.f32.gmra.mrb[0].mxu0 %v814
  %v882 = vpop.f32.mrb[0].mxu0
  %v883 = vadd.f32 0.0, %v882
  %v884 = vpop.f32.mrb[0].mxu0
  %885 = vdwg.mxu0
  %v886 = vsel %vm59, %v883, -inf
  %887 = vmax.xlane.f32.xlu0 %v886
  %v888 = vpop.xlane.xlu0 %887
  %vm889 = vcmp.gt.f32.partialorder %v888, 0.0
  %v890 = vsel %vm889, %v888, 1.0
  %v891 = vrcp.pop %v890
  %v892 = vmul.f32 %v883, %v891
  %v893 = vlog2.pop %v890
  %v894 = vmul.f32 %v893, 0.6931472
  %v895 = vadd.f32 %v780, %v894
  %vm896 = vcmp.gt.s32.totalorder %v28, 1
  %v897 = vsel %vm896, 1, 0
  %898 = vset.pattern.permute.xlu0 0
  %899 = vperm.xlu0 %898, %v897
  %v900 = vpop.permute.xlu0 %899
  %vm901 = vcmp.eq.s32.totalorder %v900, 1
  %v902 = vsel %vm901, %v892, %v779
  %v903 = vsel %vm896, %v895, %v780
  %v904 = vld [vmem:[%s0] sm:$0xff]
  %906 = vrot.lane.b32.xlu0 %v902, 8
  %v907 = vpop.permute.xlu0 %906
  %909 = vrot.lane.b32.xlu0 %v902, 16
  %v910 = vpop.permute.xlu0 %909
  %912 = vrot.lane.b32.xlu0 %v902, 24
  %v913 = vpop.permute.xlu0 %912
  %915 = vrot.lane.b32.xlu0 %v902, 32
  %v916 = vpop.permute.xlu0 %915
  %918 = vrot.lane.b32.xlu0 %v902, 40
  %v919 = vpop.permute.xlu0 %918
  %921 = vrot.lane.b32.xlu0 %v902, 48
  %v922 = vpop.permute.xlu0 %921
  %924 = vrot.lane.b32.xlu0 %v902, 56
  %v925 = vpop.permute.xlu0 %924
  %v927 = vsel %vm59, %v902, %v907
  %v928 = vsel %vm61, %v927, %v910
  %v929 = vsel %vm63, %v928, %v913
  %v930 = vsel %vm65, %v929, %v916
  %v931 = vsel %vm67, %v930, %v919
  %v932 = vsel %vm69, %v931, %v922
  %v933 = vsel %vm71, %v932, %v925
  %v934 = vmul.f32 %v904, %v933
  %v936 = vsel %vm74, %v934, 0
  %938 = vmatprep.subr.mxu0 0.0
  %939 = vmatpush1.msra.mxu0 %v20
  %940 = vmatprep.subr.mxu0 0.0
  %941 = vmatpush1.msra.mxu0 %v21
  %942 = vmatprep.subr.mxu0 0.0
  %943 = vmatpush1.msra.mxu0 %v22
  %944 = vmatprep.subr.mxu0 0.0
  %945 = vmatpush1.msra.mxu0 %v23
  %946 = vmatprep.subr.mxu0 0.0
  %947 = vmatpush1.msra.mxu0 %v24
  %948 = vmatprep.subr.mxu0 0.0
  %949 = vmatpush1.msra.mxu0 %v25
  %950 = vmatprep.subr.mxu0 0.0
  %951 = vmatpush1.msra.mxu0 %v26
  %952 = vmatprep.subr.mxu0 0.0
  %953 = vmatpush1.msra.mxu0 %v27
  %954 = vmatprep.subr.mxu0 0.0
  %955 = vmatpush1.msra.mxu0 0.0
  %956 = vmatprep.subr.mxu0 0.0
  %957 = vmatpush1.msra.mxu0 0.0
  %958 = vmatprep.subr.mxu0 0.0
  %959 = vmatpush1.msra.mxu0 0.0
  %960 = vmatprep.subr.mxu0 0.0
  %961 = vmatpush1.msra.mxu0 0.0
  %962 = vmatprep.subr.mxu0 0.0
  %963 = vmatpush1.msra.mxu0 0.0
  %964 = vmatprep.subr.mxu0 0.0
  %965 = vmatpush1.msra.mxu0 0.0
  %966 = vmatprep.subr.mxu0 0.0
  %967 = vmatpush1.msra.mxu0 0.0
  %968 = vmatprep.subr.mxu0 0.0
  %969 = vmatpush1.msra.mxu0 0.0
  %970 = vmatprep.subr.mxu0 0.0
  %971 = vmatpush1.msra.mxu0 0.0
  %972 = vmatprep.subr.mxu0 0.0
  %973 = vmatpush1.msra.mxu0 0.0
  %974 = vmatprep.subr.mxu0 0.0
  %975 = vmatpush1.msra.mxu0 0.0
  %976 = vmatprep.subr.mxu0 0.0
  %977 = vmatpush1.msra.mxu0 0.0
  %978 = vmatprep.subr.mxu0 0.0
  %979 = vmatpush1.msra.mxu0 0.0
  %980 = vmatprep.subr.mxu0 0.0
  %981 = vmatpush1.msra.mxu0 0.0
  %982 = vmatprep.subr.mxu0 0.0
  %983 = vmatpush1.msra.mxu0 0.0
  %984 = vmatprep.subr.mxu0 0.0
  %985 = vmatpush1.msra.mxu0 0.0
  %986 = vmatprep.subr.mxu0 0.0
  %987 = vmatpush1.msra.mxu0 0.0
  %988 = vmatprep.subr.mxu0 0.0
  %989 = vmatpush1.msra.mxu0 0.0
  %990 = vmatprep.subr.mxu0 0.0
  %991 = vmatpush1.msra.mxu0 0.0
  %992 = vmatprep.subr.mxu0 0.0
  %993 = vmatpush1.msra.mxu0 0.0
  %994 = vmatprep.subr.mxu0 0.0
  %995 = vmatpush1.msra.mxu0 0.0
  %996 = vmatprep.subr.mxu0 0.0
  %997 = vmatpush1.msra.mxu0 0.0
  %998 = vmatprep.subr.mxu0 0.0
  %999 = vmatpush1.msra.mxu0 0.0
  %1000 = vmatprep.subr.mxu0 0.0
  %1001 = vmatpush1.msra.mxu0 0.0
  %1002 = vmatprep.mubr.f32.mxu0 0.0
  %1003 = vmatmul.mubr.f32.gmra.mrb[0].mxu0 %v936
  %v1004 = vpop.f32.mrb[0].mxu0
  %v1005 = vadd.f32 0.0, %v1004
  %v1006 = vpop.f32.mrb[0].mxu0
  %1007 = vdwg.mxu0
  %v1008 = vsel %vm59, %v1005, -inf
  %1009 = vmax.xlane.f32.xlu0 %v1008
  %v1010 = vpop.xlane.xlu0 %1009
  %vm1011 = vcmp.gt.f32.partialorder %v1010, 0.0
  %v1012 = vsel %vm1011, %v1010, 1.0
  %v1013 = vrcp.pop %v1012
  %v1014 = vmul.f32 %v1005, %v1013
  %v1015 = vlog2.pop %v1012
  %v1016 = vmul.f32 %v1015, 0.6931472
  %v1017 = vadd.f32 %v903, %v1016
  %vm1018 = vcmp.gt.s32.totalorder %v28, 0
  %v1019 = vsel %vm1018, 1, 0
  %1020 = vset.pattern.permute.xlu0 0
  %1021 = vperm.xlu0 %1020, %v1019
  %v1022 = vpop.permute.xlu0 %1021
  %vm1023 = vcmp.eq.s32.totalorder %v1022, 1
  %v1024 = vsel %vm1023, %v1014, %v902
  %v1025 = vsel %vm1018, %v1017, %v903
  %v1026 = vld [vmem:[%s3] sm:$0xff]
  %v1028 = vsel %vm59, %v1024, 0
  %1030 = vmatprep.subr.mxu0 0.0
  %1031 = vmatpush1.msra.mxu0 %v1026
  %1032 = vmatprep.subr.mxu0 0.0
  %1033 = vmatpush1.msra.mxu0 0.0
  %1034 = vmatprep.subr.mxu0 0.0
  %1035 = vmatpush1.msra.mxu0 0.0
  %1036 = vmatprep.subr.mxu0 0.0
  %1037 = vmatpush1.msra.mxu0 0.0
  %1038 = vmatprep.subr.mxu0 0.0
  %1039 = vmatpush1.msra.mxu0 0.0
  %1040 = vmatprep.subr.mxu0 0.0
  %1041 = vmatpush1.msra.mxu0 0.0
  %1042 = vmatprep.subr.mxu0 0.0
  %1043 = vmatpush1.msra.mxu0 0.0
  %1044 = vmatprep.subr.mxu0 0.0
  %1045 = vmatpush1.msra.mxu0 0.0
  %1046 = vmatprep.subr.mxu0 0.0
  %1047 = vmatpush1.msra.mxu0 0.0
  %1048 = vmatprep.subr.mxu0 0.0
  %1049 = vmatpush1.msra.mxu0 0.0
  %1050 = vmatprep.subr.mxu0 0.0
  %1051 = vmatpush1.msra.mxu0 0.0
  %1052 = vmatprep.subr.mxu0 0.0
  %1053 = vmatpush1.msra.mxu0 0.0
  %1054 = vmatprep.subr.mxu0 0.0
  %1055 = vmatpush1.msra.mxu0 0.0
  %1056 = vmatprep.subr.mxu0 0.0
  %1057 = vmatpush1.msra.mxu0 0.0
  %1058 = vmatprep.subr.mxu0 0.0
  %1059 = vmatpush1.msra.mxu0 0.0
  %1060 = vmatprep.subr.mxu0 0.0
  %1061 = vmatpush1.msra.mxu0 0.0
  %1062 = vmatprep.subr.mxu0 0.0
  %1063 = vmatpush1.msra.mxu0 0.0
  %1064 = vmatprep.subr.mxu0 0.0
  %1065 = vmatpush1.msra.mxu0 0.0
  %1066 = vmatprep.subr.mxu0 0.0
  %1067 = vmatpush1.msra.mxu0 0.0
  %1068 = vmatprep.subr.mxu0 0.0
  %1069 = vmatpush1.msra.mxu0 0.0
  %1070 = vmatprep.subr.mxu0 0.0
  %1071 = vmatpush1.msra.mxu0 0.0
  %1072 = vmatprep.subr.mxu0 0.0
  %1073 = vmatpush1.msra.mxu0 0.0
  %1074 = vmatprep.subr.mxu0 0.0
  %1075 = vmatpush1.msra.mxu0 0.0
  %1076 = vmatprep.subr.mxu0 0.0
  %1077 = vmatpush1.msra.mxu0 0.0
  %1078 = vmatprep.subr.mxu0 0.0
  %1079 = vmatpush1.msra.mxu0 0.0
  %1080 = vmatprep.subr.mxu0 0.0
  %1081 = vmatpush1.msra.mxu0 0.0
  %1082 = vmatprep.subr.mxu0 0.0
  %1083 = vmatpush1.msra.mxu0 0.0
  %1084 = vmatprep.subr.mxu0 0.0
  %1085 = vmatpush1.msra.mxu0 0.0
  %1086 = vmatprep.subr.mxu0 0.0
  %1087 = vmatpush1.msra.mxu0 0.0
  %1088 = vmatprep.subr.mxu0 0.0
  %1089 = vmatpush1.msra.mxu0 0.0
  %1090 = vmatprep.subr.mxu0 0.0
  %1091 = vmatpush1.msra.mxu0 0.0
  %1092 = vmatprep.subr.mxu0 0.0
  %1093 = vmatpush1.msra.mxu0 0.0
  %1094 = vmatprep.mubr.f32.mxu0 0.0
  %1095 = vmatmul.mubr.f32.gmra.mrb[0].mxu0 %v1028
  %v1096 = vpop.f32.mrb[0].mxu0
  %v1097 = vadd.f32 0.0, %v1096
  %v1098 = vpop.f32.mrb[0].mxu0
  %1099 = vdwg.mxu0
  %v1100 = vlog2.pop %v1097
  %v1101 = vmul.f32 %v1100, 0.6931472
  %v1102 = vadd.f32 %v1025, %v1101
  %vm1103 = vcmask 7168
  %1104 = vst.msk [vmem:[%s5] sm:$0xff] %vm1103, %v1102
  // Predicated region
  $region22: #{tpu_custom_call.1} parent=0 // pred_check
    _
  $region23: #{tpu_custom_call.1} parent=0 // pred_check_branch
    %1106 = sbr.rel (0) target = $region25
  $region24: #{tpu_custom_call.1} parent=0 // pred_region
    _
  $region25: #{tpu_custom_call.1} parent=0 // pred_fallthru
    _
  // Predicated region
  $region26: #{tpu_custom_call.1} parent=0 // pred_check
    _
  $region27: #{tpu_custom_call.1} parent=0 // pred_check_branch
    %1108 = sbr.rel (0) target = $region29
  $region28: #{tpu_custom_call.1} parent=0 // pred_region
    _
  $region29: #{tpu_custom_call.1} parent=0 // pred_fallthru
    _

</llo_original>
